<compile_context>
chip_gen: v7x
topology: tpu7x:2x2x1
jax: 0.10.0
libtpu: 0.0.40
codegen_flags: <defaults>
</compile_context>

<pallas_src>
import functools

import jax
import jax.numpy as jnp
from jax.experimental import pallas as pl
from jax.experimental.pallas import tpu as pltpu


def _metrics_kernel(p_ref, t_ref, ade_ref, fde_ref):
    """p_ref/t_ref: [C, T, blk_B]  (coord-channels, time, batch-on-lanes)."""
    C, T, _ = p_ref.shape
    sq = None
    for c in range(C):                      # static unroll, C == 3
        pc = p_ref[c]                       # [T, blk_B] lane-dense tile
        tc = t_ref[c]
        if pc.dtype != jnp.float32:         # upcast only for sub-f32 inputs
            pc = pc.astype(jnp.float32)
            tc = tc.astype(jnp.float32)
        d = pc - tc
        sq = d * d if sq is None else sq + d * d
    dist = jnp.sqrt(sq)                                              # [T, blk_B]
    ade_ref[...] = jnp.sum(dist, axis=0, keepdims=True) * (1.0 / T)  # [1, blk_B]
    fde_ref[...] = dist[T - 1:T, :]                                  # [1, blk_B]


def _pick_block_b(B, T, C, itemsize, cap=None):
    """Largest lane-block keeping 2 inputs x 2 pipeline buffers <= ~16 MiB."""
    budget = 16 << 20
    bytes_per_lane = C * T * itemsize * 2 * 2      # 2 inputs, double-buffered
    max_blk = max(128, (budget // bytes_per_lane) // 128 * 128)
    if cap is not None:
        max_blk = max(128, min(max_blk, (cap // 128) * 128))
    if B <= max_blk:
        return B                                    # full-dim block, no grid edge
    return max_blk


@functools.partial(jax.jit, static_argnames=("max_block_b",))
def eval_metrics_pallas(preds, targets, *, max_block_b=None):
    """Per-batch-row ADE/FDE.  preds/targets: [B, T, D]; returns two [B] f32."""
    B, T, D = preds.shape
    C = min(D, 3)

    # Layout plumbing (fused by XLA under jit): keep only the used channels
    # and put the batch dimension on lanes -> [C, T, B].
    p = jnp.transpose(preds[:, :, :C], (2, 1, 0))
    t = jnp.transpose(targets[:, :, :C], (2, 1, 0))

    blk = _pick_block_b(B, T, C, p.dtype.itemsize, cap=max_block_b)
    grid = (pl.cdiv(B, blk),)

    ade, fde = pl.pallas_call(
        _metrics_kernel,
        out_shape=(
            jax.ShapeDtypeStruct((1, B), jnp.float32),
            jax.ShapeDtypeStruct((1, B), jnp.float32),
        ),
        grid=grid,
        in_specs=[
            pl.BlockSpec((C, T, blk), lambda i: (0, 0, i)),
            pl.BlockSpec((C, T, blk), lambda i: (0, 0, i)),
        ],
        out_specs=(
            pl.BlockSpec((1, blk), lambda i: (0, i)),
            pl.BlockSpec((1, blk), lambda i: (0, i)),
        ),
        compiler_params=pltpu.CompilerParams(
            dimension_semantics=("parallel",)),
    )(p, t)
    return ade[0], fde[0]


def eval_metrics_forward(preds, targets, mask):
    """Matches EvalMetrics.forward: returns (ade, fde) for masked samples."""
    mask_b = mask[:, 0, 0].astype(bool)
    ade_all, fde_all = eval_metrics_pallas(preds, targets)
    # TODO(synk): boolean gather has a data-dependent output length, so this
    # final selection cannot be jit-compiled as written (matches PyTorch).
    return ade_all[mask_b], fde_all[mask_b]


def _reference(preds, targets, mask):
    mask_b = mask[:, 0, 0].astype(bool)
    p = preds[mask_b][:, :, :3].astype(jnp.float32)
    t = targets[mask_b][:, :, :3].astype(jnp.float32)
    ade = jnp.mean(jnp.linalg.norm(p - t, axis=-1), axis=-1)
    fde = jnp.linalg.norm(p[:, -1, :] - t[:, -1, :], axis=-1)
    return ade, fde


if __name__ == "__main__":
    key = jax.random.PRNGKey(0)
    k1, k2, k3, k4, k5, k6 = jax.random.split(key, 6)

    # ---- Test 1: small f32 trajectories, single-block path -----------------
    B, T, D = 8, 8, 4
    preds = jax.random.normal(k1, (B, T, D), dtype=jnp.float32)
    targets = jax.random.normal(k2, (B, T, D), dtype=jnp.float32)
    mask_flag = (jax.random.uniform(k3, (B,)) > 0.4).astype(jnp.float32)
    mask = jnp.broadcast_to(mask_flag[:, None, None], (B, T, D))

    ade, fde = eval_metrics_forward(preds, targets, mask)
    jax.block_until_ready((ade, fde))
    ade_ref, fde_ref = _reference(preds, targets, mask)
    assert ade.shape == ade_ref.shape and fde.shape == fde_ref.shape
    assert jnp.allclose(ade, ade_ref, atol=1e-5, rtol=1e-5)
    assert jnp.allclose(fde, fde_ref, atol=1e-5, rtol=1e-5)

    # ---- Test 2: bf16, D>3, B not a multiple of 128, multi-block ragged grid
    B2, T2, D2 = 320, 12, 5
    preds2 = jax.random.normal(k4, (B2, T2, D2), dtype=jnp.float32).astype(jnp.bfloat16)
    targets2 = jax.random.normal(k5, (B2, T2, D2), dtype=jnp.float32).astype(jnp.bfloat16)
    mask2_flag = (jax.random.uniform(k6, (B2,)) > 0.5).astype(jnp.float32)
    mask2 = jnp.broadcast_to(mask2_flag[:, None, None], (B2, T2, D2))

    ade2_all, fde2_all = eval_metrics_pallas(preds2, targets2, max_block_b=128)
    jax.block_until_ready((ade2_all, fde2_all))
    mask2_b = mask2[:, 0, 0].astype(bool)
    ade2, fde2 = ade2_all[mask2_b], fde2_all[mask2_b]
    ade2_ref, fde2_ref = _reference(preds2, targets2, mask2)
    assert jnp.allclose(ade2, ade2_ref, atol=1e-4, rtol=1e-3)
    assert jnp.allclose(fde2, fde2_ref, atol=1e-4, rtol=1e-3)

    print("KERNEL_OK")
</pallas_src>

<mosaic_0001>
module attributes {stable_mosaic.version = 11 : i64} {
  func.func @_metrics_kernel(%arg0: i32, %arg1: memref<3x8x8xf32, #tpu.memory_space<vmem>>, %arg2: memref<3x8x8xf32, #tpu.memory_space<vmem>>, %arg3: memref<1x8xf32, #tpu.memory_space<vmem>>, %arg4: memref<1x8xf32, #tpu.memory_space<vmem>>) attributes {dimension_semantics = [#tpu.dimension_semantics<parallel>], iteration_bounds = array<i64: 1>, scalar_prefetch = 0 : i64, scratch_operands = 0 : i64, tpu.core_type = #tpu.core_type<tc>, window_params = [{transform_indices = @transform_0, window_bounds = array<i64: 3, 8, 8>}, {transform_indices = @transform_1, window_bounds = array<i64: 3, 8, 8>}, {transform_indices = @transform_2, window_bounds = array<i64: 1, 8>}, {transform_indices = @transform_3, window_bounds = array<i64: 1, 8>}]} {
    %c0 = arith.constant 0 : index
    %c0_0 = arith.constant 0 : index
    %c0_1 = arith.constant 0 : index
    %0 = vector.load %arg1[%c0, %c0_0, %c0_1] : memref<3x8x8xf32, #tpu.memory_space<vmem>>, vector<1x8x8xf32>
    %1 = vector.shape_cast %0 : vector<1x8x8xf32> to vector<8x8xf32>
    %c0_2 = arith.constant 0 : index
    %c0_3 = arith.constant 0 : index
    %c0_4 = arith.constant 0 : index
    %2 = vector.load %arg2[%c0_2, %c0_3, %c0_4] : memref<3x8x8xf32, #tpu.memory_space<vmem>>, vector<1x8x8xf32>
    %3 = vector.shape_cast %2 : vector<1x8x8xf32> to vector<8x8xf32>
    %4 = arith.subf %1, %3 : vector<8x8xf32>
    %5 = arith.mulf %4, %4 : vector<8x8xf32>
    %c1 = arith.constant 1 : index
    %c0_5 = arith.constant 0 : index
    %c0_6 = arith.constant 0 : index
    %6 = vector.load %arg1[%c1, %c0_5, %c0_6] : memref<3x8x8xf32, #tpu.memory_space<vmem>>, vector<1x8x8xf32>
    %7 = vector.shape_cast %6 : vector<1x8x8xf32> to vector<8x8xf32>
    %c1_7 = arith.constant 1 : index
    %c0_8 = arith.constant 0 : index
    %c0_9 = arith.constant 0 : index
    %8 = vector.load %arg2[%c1_7, %c0_8, %c0_9] : memref<3x8x8xf32, #tpu.memory_space<vmem>>, vector<1x8x8xf32>
    %9 = vector.shape_cast %8 : vector<1x8x8xf32> to vector<8x8xf32>
    %10 = arith.subf %7, %9 : vector<8x8xf32>
    %11 = arith.mulf %10, %10 : vector<8x8xf32>
    %12 = arith.addf %5, %11 : vector<8x8xf32>
    %c2 = arith.constant 2 : index
    %c0_10 = arith.constant 0 : index
    %c0_11 = arith.constant 0 : index
    %13 = vector.load %arg1[%c2, %c0_10, %c0_11] : memref<3x8x8xf32, #tpu.memory_space<vmem>>, vector<1x8x8xf32>
    %14 = vector.shape_cast %13 : vector<1x8x8xf32> to vector<8x8xf32>
    %c2_12 = arith.constant 2 : index
    %c0_13 = arith.constant 0 : index
    %c0_14 = arith.constant 0 : index
    %15 = vector.load %arg2[%c2_12, %c0_13, %c0_14] : memref<3x8x8xf32, #tpu.memory_space<vmem>>, vector<1x8x8xf32>
    %16 = vector.shape_cast %15 : vector<1x8x8xf32> to vector<8x8xf32>
    %17 = arith.subf %14, %16 : vector<8x8xf32>
    %18 = arith.mulf %17, %17 : vector<8x8xf32>
    %19 = arith.addf %12, %18 : vector<8x8xf32>
    %20 = math.sqrt %19 : vector<8x8xf32>
    %cst = arith.constant dense<0.000000e+00> : vector<8xf32>
    %21 = vector.multi_reduction <add>, %20, %cst [0] : vector<8x8xf32> to vector<8xf32>
    %22 = vector.shape_cast %21 : vector<8xf32> to vector<1x8xf32>
    %cst_15 = arith.constant 1.250000e-01 : f32
    %23 = vector.broadcast %cst_15 : f32 to vector<1x8xf32>
    %24 = arith.mulf %22, %23 : vector<1x8xf32>
    %c0_16 = arith.constant 0 : index
    %c0_17 = arith.constant 0 : index
    %25 = vector.load %arg3[%c0_16, %c0_17] : memref<1x8xf32, #tpu.memory_space<vmem>>, vector<1x8xf32>
    tpu.vector_store %arg3[%c0_16, %c0_17], %24 {strides = array<i32>} : memref<1x8xf32, #tpu.memory_space<vmem>>, vector<1x8xf32>,
    %26 = vector.extract_strided_slice %20 {offsets = [7, 0], sizes = [1, 8], strides = [1, 1]} : vector<8x8xf32> to vector<1x8xf32>
    %c0_18 = arith.constant 0 : index
    %c0_19 = arith.constant 0 : index
    %27 = vector.load %arg4[%c0_18, %c0_19] : memref<1x8xf32, #tpu.memory_space<vmem>>, vector<1x8xf32>
    tpu.vector_store %arg4[%c0_18, %c0_19], %26 {strides = array<i32>} : memref<1x8xf32, #tpu.memory_space<vmem>>, vector<1x8xf32>,
    return
  }
  func.func @transform_0(%arg0: i32) -> (i32, i32, i32) {
    %c0_i32 = arith.constant 0 : i32
    %c0_i32_0 = arith.constant 0 : i32
    %c0_i32_1 = arith.constant 0 : i32
    return %c0_i32, %c0_i32_0, %arg0 : i32, i32, i32
  }
  func.func @transform_1(%arg0: i32) -> (i32, i32, i32) {
    %c0_i32 = arith.constant 0 : i32
    %c0_i32_0 = arith.constant 0 : i32
    %c0_i32_1 = arith.constant 0 : i32
    return %c0_i32, %c0_i32_0, %arg0 : i32, i32, i32
  }
  func.func @transform_2(%arg0: i32) -> (i32, i32) {
    %c0_i32 = arith.constant 0 : i32
    %c0_i32_0 = arith.constant 0 : i32
    return %c0_i32, %arg0 : i32, i32
  }
  func.func @transform_3(%arg0: i32) -> (i32, i32) {
    %c0_i32 = arith.constant 0 : i32
    %c0_i32_0 = arith.constant 0 : i32
    return %c0_i32, %arg0 : i32, i32
  }
}

</mosaic_0001>

<llo_original>
// kernel: eval_metrics_pallas.1
$region0: #{eval_metrics_pallas.1}
  #allocation0 [shape = 'u32[]', space=smem, size = 0x4, offset = 0x4, fixed_abs, tag = 'smem constant byte address 0x4 - core index']
  #allocation1 [shape = 'u32[144,128]{1,0:T(1,128)}', space=vmem, size = 0x12000, scoped, tag = 'internal scratch']
  %s0 = inlined_call_operand.vmem [shape: f32[3,8,8], index: 0, kind: input, shape index: {}]
  %s1 = inlined_call_operand.vmem [shape: f32[3,8,8], index: 1, kind: input, shape index: {}]
  %s2 = inlined_call_operand.hbm [shape: f32[1,8], index: 2, kind: output, shape index: {0}]
  %s3 = inlined_call_operand.hbm [shape: f32[1,8], index: 3, kind: output, shape index: {1}]
  %4 = xla_tuple %s2, %s3
  %s5 = sld [smem:[#allocation0]]
  $region26: #{eval_metrics_pallas.1} parent=0
    _
  %s7 = ssub.s32 1, %s5
  %s8 = scalar_select 0, %s7, %s5
  $region1: #{eval_metrics_pallas.1} parent=0
    #allocation2 [shape = 'u8[512]{0}', space=vmem, size = 0x400, scoped, tag = 'output window, operand 0, single buffered']
    #allocation3 [shape = 's32[1]{0}', space=sflag, size = 0x4, scoped, tag = 'scoped memory for eval_metrics_pallas.1']
    #allocation4 [shape = 'u8[512]{0}', space=vmem, size = 0x400, scoped, tag = 'output window, operand 1, single buffered']
    #allocation5 [shape = 's32[1]{0}', space=sflag, size = 0x4, scoped, tag = 'scoped memory for eval_metrics_pallas.1']
    %9 = vsyncpa [#allocation3], 0
    %10 = vsyncpa [#allocation5], 0
    // Predicated region
    $region2: #{eval_metrics_pallas.1} parent=1 // pred_check
      _
    $region3: #{eval_metrics_pallas.1} parent=1 // pred_check_branch
      %12 = sbr.rel (0) target = $region5
    $region4: #{eval_metrics_pallas.1} parent=1 // pred_region
      _
    $region5: #{eval_metrics_pallas.1} parent=1 // pred_fallthru
      _
    // Predicated region
    $region6: #{eval_metrics_pallas.1} parent=1 // pred_check
      _
    $region7: #{eval_metrics_pallas.1} parent=1 // pred_check_branch
      %14 = sbr.rel (0) target = $region9
    $region8: #{eval_metrics_pallas.1} parent=1 // pred_region
      _
    $region9: #{eval_metrics_pallas.1} parent=1 // pred_fallthru
      _
    %v15 = vld [vmem:[%s0] sm:$0xff]
    %v16 = vld [vmem:[%s1] sm:$0xff]
    %v17 = vsub.f32 %v15, %v16
    %v18 = vmul.f32 %v17, %v17
    %s19 = scalar_lea.vmem %s0, 8
    %v20 = vld [vmem:[%s19] sm:$0xff]
    %s21 = scalar_lea.vmem %s1, 8
    %v22 = vld [vmem:[%s21] sm:$0xff]
    %v23 = vsub.f32 %v20, %v22
    %v24 = vmul.f32 %v23, %v23
    %v25 = vadd.f32 %v18, %v24
    %s26 = scalar_lea.vmem %s0, 16
    %v27 = vld [vmem:[%s26] sm:$0xff]
    %s28 = scalar_lea.vmem %s1, 16
    %v29 = vld [vmem:[%s28] sm:$0xff]
    %v30 = vsub.f32 %v27, %v29
    %v31 = vmul.f32 %v30, %v30
    %v32 = vadd.f32 %v25, %v31
    %v33 = vrsqrt.pop %v32
    %v34 = vmul.f32 %v32, %v33
    %vm35 = vcmp.eq.f32.partialorder %v32, inf
    %v36 = vsel %vm35, %v32, %v34
    %vm37 = vcmp.eq.f32.partialorder %v32, 0.0
    %v38 = vand.u32 %v32, 2147483648
    %v39 = vsel %vm37, %v38, %v36
    %vm40 = vcmask 64512
    %v41 = vsel %vm40, %v39, 0.0
    %v42 = vrot.slane %v41, 4
    %v43 = vadd.f32 %v41, %v42
    %v44 = vrot.slane %v43, 2
    %v45 = vadd.f32 %v43, %v44
    %v46 = vrot.slane %v45, 1
    %v47 = vadd.f32 %v45, %v46
    %v48 = vmul.f32 %v47, 0.125
    %vm49 = vcmask 57344
    %50 = vst.msk [vmem:[#allocation2] sm:$0x1] %vm49, %v48
    %vm51 = vcmask 64519
    %52 = vst.msk [vmem:[#allocation4 - $0x7] sm:$0x80] %vm51, %v39
    // Predicated region
    $region10: #{eval_metrics_pallas.1} parent=1 // pred_check
      _
    $region11: #{eval_metrics_pallas.1} parent=1 // pred_check_branch
      %54 = sbr.rel (0) target = $region13
    $region12: #{eval_metrics_pallas.1} parent=1 // pred_region
      %s56 = ssub.s32 16, 16
      %57 = vsyncadd [#allocation3], %s56
      %s59 = sshll.u32 [#allocation2], 4
      %s60 = int_to_ptr.vmem [resolvable:$true] %s59
      %62 = dma.vmem_to_hbm [thread:$0]  %s60, 16, %s2, [#allocation3]
    $region13: #{eval_metrics_pallas.1} parent=1 // pred_fallthru
      _
    // Predicated region
    $region14: #{eval_metrics_pallas.1} parent=1 // pred_check
      _
    $region15: #{eval_metrics_pallas.1} parent=1 // pred_check_branch
      %64 = sbr.rel (0) target = $region17
    $region16: #{eval_metrics_pallas.1} parent=1 // pred_region
      %s66 = ssub.s32 16, 16
      %67 = vsyncadd [#allocation5], %s66
      %s69 = sshll.u32 [#allocation4], 4
      %s70 = int_to_ptr.vmem [resolvable:$true] %s69
      %72 = dma.vmem_to_hbm [thread:$0]  %s70, 16, %s3, [#allocation5]
    $region17: #{eval_metrics_pallas.1} parent=1 // pred_fallthru
      _
    // Predicated region
    $region18: #{eval_metrics_pallas.1} parent=1 // pred_check
      _
    $region19: #{eval_metrics_pallas.1} parent=1 // pred_check_branch
      %74 = sbr.rel (0) target = $region21
    $region20: #{eval_metrics_pallas.1} parent=1 // pred_region
      %75 = dma.done [#allocation3], 16
    $region21: #{eval_metrics_pallas.1} parent=1 // pred_fallthru
      _
    // Predicated region
    $region22: #{eval_metrics_pallas.1} parent=1 // pred_check
      _
    $region23: #{eval_metrics_pallas.1} parent=1 // pred_check_branch
      %77 = sbr.rel (0) target = $region25
    $region24: #{eval_metrics_pallas.1} parent=1 // pred_region
      %78 = dma.done [#allocation5], 16
    $region25: #{eval_metrics_pallas.1} parent=1 // pred_fallthru
      _
    %79 = vsyncpa [#allocation3], 1
    %80 = vsyncpa [#allocation5], 1

</llo_original>
